<compile_context>
chip_gen: v6e
topology: v6e:2x2x1
jax: 0.10.0
libtpu: 0.0.40
codegen_flags: <defaults>
</compile_context>

<pallas_src>
import functools

import jax
import jax.numpy as jnp
from jax import lax
from jax.experimental import pallas as pl
from jax.experimental.pallas import tpu as pltpu


_UNROLL_CAP = 8                    # max batches per block (static unroll stays small)
_VMEM_BUDGET = 12 * 1024 * 1024    # fits v5e's 16 MiB default scoped VMEM with headroom


def _lane_target():
    """MXU width target per batch block: 128 on v5e, 256 on v6e/v7x."""
    try:
        kind = jax.devices()[0].device_kind.lower()
    except Exception:
        return 256
    if "v5 lite" in kind or "v5lite" in kind or "v5e" in kind:
        return 128
    return 256


def _block_vmem_bytes(bb, seq_len, C, rows):
    cols = bb * seq_len
    x_blk = C * cols * 4
    o_blk = C * cols * 4
    proj = rows * cols * 4
    score = 2 * seq_len * seq_len * 4          # scores + probabilities
    w = rows * C * 4
    # x / out blocks are double-buffered by the BlockSpec pipeline.
    return 2 * (x_blk + o_blk) + proj + score + w + (1 << 16)


def _pick_batch_block(B, seq_len, C, rows, lane_target):
    """Pick batches-per-block: lane-legal, VMEM-budgeted, unroll-capped."""

    def lane_legal(d):
        # Output/input block last dim must be a multiple of 128 lanes, or the
        # block must cover the full array (single grid block).
        return (B // d == 1) or (d * seq_len) % 128 == 0

    def fits(d):
        return _block_vmem_bytes(d, seq_len, C, rows) <= _VMEM_BUDGET

    divisors = [d for d in range(1, B + 1) if B % d == 0]
    target = max(1, pl.cdiv(lane_target, seq_len))
    cands = [d for d in divisors if lane_legal(d) and fits(d) and d <= _UNROLL_CAP]
    if cands:
        below = [d for d in cands if d <= target]
        bb = max(below) if below else min(cands)
    else:
        # Full-array single block is always lane-legal.
        # TODO(synk): key-tiled online softmax + fori_loop batch loop for the
        # large-L / large-B regime instead of this full-block fallback.
        bb = B
    # Prefer >= 2 grid blocks (v7x second TensorCore / megacore) when a smaller
    # lane-legal block exists.
    if B // bb == 1 and B > 1:
        alt = [d for d in divisors
               if d < B and lane_legal(d) and fits(d) and d <= _UNROLL_CAP]
        if alt:
            bb = max(alt)
    return bb


def _self_attention_kernel(x_ref, w_ref, b_ref, gamma_ref, o_ref, *,
                           n_batch, seq_len, qk_pad, exact_softmax):
    """One batch block.  x_ref block: (C, n_batch*seq_len), lane-dense."""
    mxu_dtype = w_ref.dtype                         # f32 or bf16 MXU operands
    x = x_ref[...]                                  # (C, nB*L) float32

    # Fused Q|K|V projection for every batch in the block: one MXU matmul.
    # Operands in compute dtype, accumulation f32, bias add f32.
    proj = jnp.dot(w_ref[...], x.astype(mxu_dtype),
                   preferred_element_type=jnp.float32) + b_ref[...]   # (rows, nB*L)
    q_all = proj[:qk_pad]                           # sublane-aligned static slices
    k_all = proj[qk_pad:2 * qk_pad]
    v_all = proj[2 * qk_pad:]
    gamma = gamma_ref[0]                            # scalar from SMEM

    def attend(b):
        lo = b * seq_len
        qb = lax.slice_in_dim(q_all, lo, lo + seq_len, axis=1).astype(mxu_dtype)
        kb = lax.slice_in_dim(k_all, lo, lo + seq_len, axis=1).astype(mxu_dtype)
        vb = lax.slice_in_dim(v_all, lo, lo + seq_len, axis=1).astype(mxu_dtype)

        # s[l, m] = sum_c q[c, l] * k[c, m]  == Q^T K (no transpose materialized;
        # zero-padded q/k rows contribute nothing).
        s = lax.dot_general(qb, kb, (((0,), (0,)), ((), ())),
                            preferred_element_type=jnp.float32)       # (L, L)
        s = s - jnp.max(s, axis=-1, keepdims=True)
        e = jnp.exp(s)
        denom = jnp.sum(e, axis=-1, keepdims=True)
        if exact_softmax:
            attn = e / denom                                   # exact f32 path
        else:
            attn = e * pl.reciprocal(denom, approx=True)       # EUP slot, ~free

        # out[c, l] = sum_m v[c, m] * attn[l, m]  == V @ attn^T (no transpose)
        out_b = lax.dot_general(vb, attn.astype(mxu_dtype),
                                (((1,), (1,)), ((), ())),
                                preferred_element_type=jnp.float32)   # (C, L)

        # Direct per-batch store (no outs list / lane concat); residual re-read
        # from the VMEM ref keeps the whole-x live range short.
        xb = x_ref[:, pl.ds(lo, seq_len)]
        o_ref[:, pl.ds(lo, seq_len)] = (gamma * out_b + xb).astype(o_ref.dtype)

    # Wrapper caps n_batch at _UNROLL_CAP, so this static unroll stays small.
    for b in range(n_batch):
        attend(b)


def self_attention_1d(x, wq, bq, wk, bk, wv, bv, gamma, *,
                      compute_dtype=jnp.float32):
    """x: (B, C, L) f32; wq/wk: (C//8, C); wv: (C, C); biases: (out,); gamma scalar."""
    B, C, L = x.shape
    Cq = wq.shape[0]
    qk_pad = ((max(Cq, 1) + 7) // 8) * 8            # sublane-align q/k row count

    # Lane-dense layout: column index = b * L + l  (one matmul over all batches).
    # TODO(synk): adjacent layers could produce/consume this (C, B*L) layout
    # directly to avoid the transpose HBM passes at production sizes.
    x2d = jnp.transpose(x, (1, 0, 2)).reshape(C, B * L).astype(jnp.float32)

    def pad_rows(w, b):
        pad = qk_pad - w.shape[0]
        if pad:
            w = jnp.concatenate([w, jnp.zeros((pad, w.shape[1]), w.dtype)], axis=0)
            b = jnp.concatenate([b, jnp.zeros((pad,), b.dtype)], axis=0)
        return w, b

    wq_p, bq_p = pad_rows(wq, bq)
    wk_p, bk_p = pad_rows(wk, bk)
    w_all = jnp.concatenate([wq_p, wk_p, wv], axis=0).astype(compute_dtype)   # (rows, C)
    b_all = jnp.concatenate([bq_p, bk_p, bv], axis=0).reshape(-1, 1).astype(jnp.float32)
    gamma_arr = jnp.asarray(gamma, jnp.float32).reshape(1)
    rows = 2 * qk_pad + C

    bb = _pick_batch_block(B, L, C, rows, _lane_target())
    n_blk = B // bb
    cols = bb * L

    kernel = functools.partial(
        _self_attention_kernel, n_batch=bb, seq_len=L, qk_pad=qk_pad,
        exact_softmax=(jnp.dtype(compute_dtype) == jnp.dtype(jnp.float32)))

    out2d = pl.pallas_call(
        kernel,
        out_shape=jax.ShapeDtypeStruct((C, B * L), jnp.float32),
        grid_spec=pltpu.PrefetchScalarGridSpec(
            num_scalar_prefetch=0,
            grid=(n_blk,),
            in_specs=[
                pl.BlockSpec((C, cols), lambda i: (0, i)),            # x (lane-dense)
                pl.BlockSpec((rows, C), lambda i: (0, 0)),            # Wq|pad|Wk|pad|Wv
                pl.BlockSpec((rows, 1), lambda i: (0, 0)),            # stacked biases
                pl.BlockSpec(memory_space=pltpu.MemorySpace.SMEM),    # gamma (scalar)
            ],
            out_specs=pl.BlockSpec((C, cols), lambda i: (0, i)),
        ),
        compiler_params=pltpu.CompilerParams(
            dimension_semantics=("parallel",)),
    )(x2d, w_all, b_all, gamma_arr)

    return out2d.reshape(C, B, L).transpose(1, 0, 2)


def _spectral_normalize(w):
    # spectral_norm divides the (out, in) weight by its largest singular value.
    sigma = jnp.linalg.svd(w, compute_uv=False)[0]
    return w / sigma


def _reference(x, wq, bq, wk, bk, wv, bv, gamma):
    # pure-JAX reference matching the PyTorch forward
    q = jnp.einsum('oc,bcl->bol', wq, x) + bq[None, :, None]
    k = jnp.einsum('oc,bcl->bol', wk, x) + bk[None, :, None]
    v = jnp.einsum('oc,bcl->bol', wv, x) + bv[None, :, None]
    attn = jax.nn.softmax(jnp.einsum('bql,bqm->blm', q, k), axis=-1)
    out = jnp.einsum('bcl,bml->bcm', v, attn)
    return gamma * out + x


def _make_inputs(B, C, L, seed=0):
    Cq = C // 8
    key = jax.random.PRNGKey(seed)
    kx, kq, kk, kv, kbq, kbk, kbv = jax.random.split(key, 7)
    x = jax.random.normal(kx, (B, C, L), jnp.float32)
    wq = _spectral_normalize(jax.random.normal(kq, (Cq, C), jnp.float32) * 0.1)
    wk = _spectral_normalize(jax.random.normal(kk, (Cq, C), jnp.float32) * 0.1)
    wv = _spectral_normalize(jax.random.normal(kv, (C, C), jnp.float32) * 0.1)
    bq = jax.random.normal(kbq, (Cq,), jnp.float32) * 0.01
    bk = jax.random.normal(kbk, (Cq,), jnp.float32) * 0.01
    bv = jax.random.normal(kbv, (C,), jnp.float32) * 0.01
    # Module __init__ sets gamma = 0 (out == x); use a nonzero deterministic
    # value so the attention path is actually exercised.
    gamma = jnp.float32(0.5)
    return x, wq, bq, wk, bk, wv, bv, gamma


if __name__ == "__main__":
    # Case 1: in_dim = 32 -> query/key dim = 4; single batch block, grid=(1,).
    args1 = _make_inputs(B=2, C=32, L=64)
    ref1 = _reference(*args1)

    out1 = jax.block_until_ready(self_attention_1d(*args1))
    assert out1.shape == (2, 32, 64)
    assert jnp.allclose(out1, ref1, atol=1e-3, rtol=1e-3), "f32 kernel mismatch (case 1)"

    # bf16 MXU-operand path: bf16 operands for all three matmuls, f32 accumulation,
    # f32 softmax statistics and residual.
    out1_bf16 = jax.block_until_ready(
        self_attention_1d(*args1, compute_dtype=jnp.bfloat16))
    assert jnp.allclose(out1_bf16, ref1, atol=2e-2, rtol=2e-2), "bf16 kernel mismatch (case 1)"

    # Case 2: multi-block grid (B=8, L=128 -> 2 batches/block, grid=(4,)),
    # exercising the parallel grid axis and lane-dense 256-column blocks.
    args2 = _make_inputs(B=8, C=32, L=128, seed=1)
    ref2 = _reference(*args2)
    out2 = jax.block_until_ready(self_attention_1d(*args2))
    assert out2.shape == (8, 32, 128)
    assert jnp.allclose(out2, ref2, atol=1e-3, rtol=1e-3), "f32 kernel mismatch (case 2)"

    print("KERNEL_OK")
</pallas_src>

<mosaic_0001>
module attributes {stable_mosaic.version = 11 : i64} {
  func.func @_self_attention_kernel(%arg0: i32, %arg1: memref<32x128xf32, #tpu.memory_space<vmem>>, %arg2: memref<48x32xf32, #tpu.memory_space<vmem>>, %arg3: memref<48x1xf32, #tpu.memory_space<vmem>>, %arg4: memref<1xf32, #tpu.memory_space<smem>>, %arg5: memref<32x128xf32, #tpu.memory_space<vmem>>) attributes {dimension_semantics = [#tpu.dimension_semantics<parallel>], iteration_bounds = array<i64: 1>, scalar_prefetch = 0 : i64, scratch_operands = 0 : i64, tpu.core_type = #tpu.core_type<tc>, window_params = [{transform_indices = @transform_0, window_bounds = array<i64: 32, 128>}, {pipeline_mode = #tpu.pipeline_mode<synchronous>, transform_indices = @transform_1, window_bounds = array<i64: 48, 32>}, {pipeline_mode = #tpu.pipeline_mode<synchronous>, transform_indices = @transform_2, window_bounds = array<i64: 48, 1>}, {transform_indices = @transform_3, window_bounds = array<i64: 1>}, {transform_indices = @transform_4, window_bounds = array<i64: 32, 128>}]} {
    %c0 = arith.constant 0 : index
    %c0_0 = arith.constant 0 : index
    %0 = vector.load %arg1[%c0, %c0_0] : memref<32x128xf32, #tpu.memory_space<vmem>>, vector<32x128xf32>
    %c0_1 = arith.constant 0 : index
    %c0_2 = arith.constant 0 : index
    %1 = vector.load %arg2[%c0_1, %c0_2] : memref<48x32xf32, #tpu.memory_space<vmem>>, vector<48x32xf32>
    %cst = arith.constant dense<0.000000e+00> : vector<48x128xf32>
    %2 = tpu.matmul %1, %0, %cst {dimension_numbers = #tpu.dot_dimension_numbers<[1], [0], [0], [1], [0, 0, 1, 1], [], []>} : vector<48x32xf32>, vector<32x128xf32>, vector<48x128xf32> -> vector<48x128xf32>
    %c0_3 = arith.constant 0 : index
    %c0_4 = arith.constant 0 : index
    %3 = vector.load %arg3[%c0_3, %c0_4] : memref<48x1xf32, #tpu.memory_space<vmem>>, vector<48x1xf32>
    %4 = vector.broadcast %3 : vector<48x1xf32> to vector<48x128xf32>
    %5 = arith.addf %2, %4 : vector<48x128xf32>
    %6 = vector.extract_strided_slice %5 {offsets = [0, 0], sizes = [8, 128], strides = [1, 1]} : vector<48x128xf32> to vector<8x128xf32>
    %7 = vector.extract_strided_slice %5 {offsets = [8, 0], sizes = [8, 128], strides = [1, 1]} : vector<48x128xf32> to vector<8x128xf32>
    %8 = vector.extract_strided_slice %5 {offsets = [16, 0], sizes = [32, 128], strides = [1, 1]} : vector<48x128xf32> to vector<32x128xf32>
    %c0_5 = arith.constant 0 : index
    %9 = memref.load %arg4[%c0_5] : memref<1xf32, #tpu.memory_space<smem>>
    %10 = vector.extract_strided_slice %6 {offsets = [0, 0], sizes = [8, 64], strides = [1, 1]} : vector<8x128xf32> to vector<8x64xf32>
    %11 = vector.extract_strided_slice %7 {offsets = [0, 0], sizes = [8, 64], strides = [1, 1]} : vector<8x128xf32> to vector<8x64xf32>
    %12 = vector.extract_strided_slice %8 {offsets = [0, 0], sizes = [32, 64], strides = [1, 1]} : vector<32x128xf32> to vector<32x64xf32>
    %cst_6 = arith.constant dense<0.000000e+00> : vector<64x64xf32>
    %13 = tpu.matmul %10, %11, %cst_6 {dimension_numbers = #tpu.dot_dimension_numbers<[0], [0], [1], [1], [0, 1, 1, 1], [], []>} : vector<8x64xf32>, vector<8x64xf32>, vector<64x64xf32> -> vector<64x64xf32>
    %cst_7 = arith.constant dense<0xFF800000> : vector<64xf32>
    %14 = vector.multi_reduction <maximumf>, %13, %cst_7 [1] : vector<64x64xf32> to vector<64xf32>
    %15 = vector.shape_cast %14 : vector<64xf32> to vector<64x1xf32>
    %16 = vector.broadcast %15 : vector<64x1xf32> to vector<64x64xf32>
    %17 = arith.subf %13, %16 : vector<64x64xf32>
    %18 = math.exp %17 : vector<64x64xf32>
    %cst_8 = arith.constant dense<0.000000e+00> : vector<64xf32>
    %19 = vector.multi_reduction <add>, %18, %cst_8 [1] : vector<64x64xf32> to vector<64xf32>
    %20 = vector.shape_cast %19 : vector<64xf32> to vector<64x1xf32>
    %21 = vector.broadcast %20 : vector<64x1xf32> to vector<64x64xf32>
    %22 = arith.divf %18, %21 : vector<64x64xf32>
    %cst_9 = arith.constant dense<0.000000e+00> : vector<32x64xf32>
    %23 = tpu.matmul %12, %22, %cst_9 {dimension_numbers = #tpu.dot_dimension_numbers<[1], [1], [0], [0], [0, 0, 1, 0], [], []>} : vector<32x64xf32>, vector<64x64xf32>, vector<32x64xf32> -> vector<32x64xf32>
    %c0_10 = arith.constant 0 : index
    %c0_11 = arith.constant 0 : index
    %24 = vector.load %arg1[%c0_10, %c0_11] : memref<32x128xf32, #tpu.memory_space<vmem>>, vector<32x64xf32>
    %25 = vector.broadcast %9 : f32 to vector<32x64xf32>
    %26 = arith.mulf %25, %23 : vector<32x64xf32>
    %27 = arith.addf %26, %24 : vector<32x64xf32>
    %c0_12 = arith.constant 0 : index
    %c0_13 = arith.constant 0 : index
    %28 = vector.load %arg5[%c0_12, %c0_13] : memref<32x128xf32, #tpu.memory_space<vmem>>, vector<32x64xf32>
    tpu.vector_store %arg5[%c0_12, %c0_13], %27 {strides = array<i32>} : memref<32x128xf32, #tpu.memory_space<vmem>>, vector<32x64xf32>,
    %29 = vector.extract_strided_slice %6 {offsets = [0, 64], sizes = [8, 64], strides = [1, 1]} : vector<8x128xf32> to vector<8x64xf32>
    %30 = vector.extract_strided_slice %7 {offsets = [0, 64], sizes = [8, 64], strides = [1, 1]} : vector<8x128xf32> to vector<8x64xf32>
    %31 = vector.extract_strided_slice %8 {offsets = [0, 64], sizes = [32, 64], strides = [1, 1]} : vector<32x128xf32> to vector<32x64xf32>
    %cst_14 = arith.constant dense<0.000000e+00> : vector<64x64xf32>
    %32 = tpu.matmul %29, %30, %cst_14 {dimension_numbers = #tpu.dot_dimension_numbers<[0], [0], [1], [1], [0, 1, 1, 1], [], []>} : vector<8x64xf32>, vector<8x64xf32>, vector<64x64xf32> -> vector<64x64xf32>
    %cst_15 = arith.constant dense<0xFF800000> : vector<64xf32>
    %33 = vector.multi_reduction <maximumf>, %32, %cst_15 [1] : vector<64x64xf32> to vector<64xf32>
    %34 = vector.shape_cast %33 : vector<64xf32> to vector<64x1xf32>
    %35 = vector.broadcast %34 : vector<64x1xf32> to vector<64x64xf32>
    %36 = arith.subf %32, %35 : vector<64x64xf32>
    %37 = math.exp %36 : vector<64x64xf32>
    %cst_16 = arith.constant dense<0.000000e+00> : vector<64xf32>
    %38 = vector.multi_reduction <add>, %37, %cst_16 [1] : vector<64x64xf32> to vector<64xf32>
    %39 = vector.shape_cast %38 : vector<64xf32> to vector<64x1xf32>
    %40 = vector.broadcast %39 : vector<64x1xf32> to vector<64x64xf32>
    %41 = arith.divf %37, %40 : vector<64x64xf32>
    %cst_17 = arith.constant dense<0.000000e+00> : vector<32x64xf32>
    %42 = tpu.matmul %31, %41, %cst_17 {dimension_numbers = #tpu.dot_dimension_numbers<[1], [1], [0], [0], [0, 0, 1, 0], [], []>} : vector<32x64xf32>, vector<64x64xf32>, vector<32x64xf32> -> vector<32x64xf32>
    %c0_18 = arith.constant 0 : index
    %c64 = arith.constant 64 : index
    %43 = vector.load %arg1[%c0_18, %c64] : memref<32x128xf32, #tpu.memory_space<vmem>>, vector<32x64xf32>
    %44 = vector.broadcast %9 : f32 to vector<32x64xf32>
    %45 = arith.mulf %44, %42 : vector<32x64xf32>
    %46 = arith.addf %45, %43 : vector<32x64xf32>
    %c0_19 = arith.constant 0 : index
    %c64_20 = arith.constant 64 : index
    %47 = vector.load %arg5[%c0_19, %c64_20] : memref<32x128xf32, #tpu.memory_space<vmem>>, vector<32x64xf32>
    tpu.vector_store %arg5[%c0_19, %c64_20], %46 {strides = array<i32>} : memref<32x128xf32, #tpu.memory_space<vmem>>, vector<32x64xf32>,
    return
  }
  func.func @transform_0(%arg0: i32) -> (i32, i32) {
    %c0_i32 = arith.constant 0 : i32
    %c0_i32_0 = arith.constant 0 : i32
    return %c0_i32, %arg0 : i32, i32
  }
  func.func @transform_1(%arg0: i32) -> (i32, i32) {
    %c0_i32 = arith.constant 0 : i32
    %c0_i32_0 = arith.constant 0 : i32
    %c0_i32_1 = arith.constant 0 : i32
    return %c0_i32, %c0_i32_0 : i32, i32
  }
  func.func @transform_2(%arg0: i32) -> (i32, i32) {
    %c0_i32 = arith.constant 0 : i32
    %c0_i32_0 = arith.constant 0 : i32
    %c0_i32_1 = arith.constant 0 : i32
    return %c0_i32, %c0_i32_0 : i32, i32
  }
  func.func @transform_3(%arg0: i32) -> i32 {
    %c0_i32 = arith.constant 0 : i32
    %c0_i32_0 = arith.constant 0 : i32
    return %c0_i32 : i32
  }
  func.func @transform_4(%arg0: i32) -> (i32, i32) {
    %c0_i32 = arith.constant 0 : i32
    %c0_i32_0 = arith.constant 0 : i32
    return %c0_i32, %arg0 : i32, i32
  }
}

</mosaic_0001>

<llo_original>
// kernel: tpu_custom_call.1
$region0: #{tpu_custom_call.1}
  #allocation0 [shape = 'u32[]', space=smem, size = 0x4, offset = 0x4, fixed_abs, tag = 'smem constant byte address 0x4 - core index']
  #allocation1 [shape = 'u32[144,128]{1,0:T(1,128)}', space=vmem, size = 0x12000, scoped, tag = 'internal scratch']
  #allocation2 [shape = 'f32[1]{0:T(128)S(6)}', space=smem, size = 0x200, scoped, tag = 'scoped memory for tpu_custom_call.1']
  %s0 = inlined_call_operand.vmem [shape: f32[32,128], index: 0, kind: input, shape index: {}]
  %s1 = inlined_call_operand.vmem [shape: f32[48,32], index: 1, kind: input, shape index: {}]
  %s2 = inlined_call_operand.vmem [shape: f32[48,1], index: 2, kind: input, shape index: {}]
  %s3 = inlined_call_operand.<no memory space> [shape: f32[1], index: 3, kind: input, shape index: {}]
  %s4 = inlined_call_operand.hbm [shape: f32[32,128], index: 4, kind: output, shape index: {}]
  %s5 = sld [smem:[#allocation0]]
  $region26: #{tpu_custom_call.1} parent=0
    _
  %s7 = ssub.s32 1, %s5
  %s8 = scalar_select 0, %s7, %s5
  %9 = sst [smem:[#allocation2]] %s3
  $region1: #{tpu_custom_call.1} parent=0
    #allocation3 [shape = 'u8[16384]{0}', space=vmem, size = 0x4000, scoped, tag = 'output window, operand 0, single buffered']
    #allocation4 [shape = 's32[1]{0}', space=sflag, size = 0x4, scoped, tag = 'scoped memory for tpu_custom_call.1']
    %10 = vsyncpa [#allocation4], 0
    // Predicated region
    $region2: #{tpu_custom_call.1} parent=1 // pred_check
      _
    $region3: #{tpu_custom_call.1} parent=1 // pred_check_branch
      %12 = sbr.rel (0) target = $region5
    $region4: #{tpu_custom_call.1} parent=1 // pred_region
      _
    $region5: #{tpu_custom_call.1} parent=1 // pred_fallthru
      _
    // Predicated region
    $region6: #{tpu_custom_call.1} parent=1 // pred_check
      _
    $region7: #{tpu_custom_call.1} parent=1 // pred_check_branch
      %14 = sbr.rel (0) target = $region9
    $region8: #{tpu_custom_call.1} parent=1 // pred_region
      _
    $region9: #{tpu_custom_call.1} parent=1 // pred_fallthru
      _
    // Predicated region
    $region10: #{tpu_custom_call.1} parent=1 // pred_check
      _
    $region11: #{tpu_custom_call.1} parent=1 // pred_check_branch
      %16 = sbr.rel (0) target = $region13
    $region12: #{tpu_custom_call.1} parent=1 // pred_region
      _
    $region13: #{tpu_custom_call.1} parent=1 // pred_fallthru
      _
    // Predicated region
    $region14: #{tpu_custom_call.1} parent=1 // pred_check
      _
    $region15: #{tpu_custom_call.1} parent=1 // pred_check_branch
      %18 = sbr.rel (0) target = $region17
    $region16: #{tpu_custom_call.1} parent=1 // pred_region
      _
    $region17: #{tpu_custom_call.1} parent=1 // pred_fallthru
      _
    %v19 = vld [vmem:[%s0] sm:$0xff]
    %v20 = vld [vmem:[%s0 + $0x8] sm:$0xff]
    %v21 = vld [vmem:[%s0 + $0x10] sm:$0xff]
    %v22 = vld [vmem:[%s0 + $0x18] sm:$0xff]
    %v23 = vld [vmem:[%s1] sm:$0xff]
    %v24 = vld [vmem:[%s1 + $0x8] sm:$0xff]
    %v25 = vld [vmem:[%s1 + $0x10] sm:$0xff]
    %v26 = vld [vmem:[%s1 + $0x18] sm:$0xff]
    %v27 = vld [vmem:[%s1 + $0x20] sm:$0xff]
    %v28 = vld [vmem:[%s1 + $0x28] sm:$0xff]
    %v29 = vld [vmem:[%s2] sm:$0xff]
    %v30 = vld [vmem:[%s2 + $0x8] sm:$0xff]
    %v31 = vld [vmem:[%s2 + $0x10] sm:$0xff]
    %v32 = vld [vmem:[%s2 + $0x18] sm:$0xff]
    %v33 = vld [vmem:[%s2 + $0x20] sm:$0xff]
    %v34 = vld [vmem:[%s2 + $0x28] sm:$0xff]
    %36 = vset.pattern.permute.xlu0 0
    %37 = vperm.xlu0 %36, %v29
    %v38 = vpop.permute.xlu0 %37
    %41 = vset.pattern.permute.xlu0 0
    %42 = vperm.xlu0 %41, %v30
    %v43 = vpop.permute.xlu0 %42
    %46 = vset.pattern.permute.xlu0 0
    %47 = vperm.xlu0 %46, %v31
    %v48 = vpop.permute.xlu0 %47
    %51 = vset.pattern.permute.xlu0 0
    %52 = vperm.xlu0 %51, %v32
    %v53 = vpop.permute.xlu0 %52
    %56 = vset.pattern.permute.xlu0 0
    %57 = vperm.xlu0 %56, %v33
    %v58 = vpop.permute.xlu0 %57
    %61 = vset.pattern.permute.xlu0 0
    %62 = vperm.xlu0 %61, %v34
    %v63 = vpop.permute.xlu0 %62
    %vm65 = vcmask 261120
    %v67 = vsel %vm65, %v23, 0
    %v70 = vsel %vm65, %v24, 0
    %v73 = vsel %vm65, %v25, 0
    %v76 = vsel %vm65, %v26, 0
    %v79 = vsel %vm65, %v27, 0
    %v82 = vsel %vm65, %v28, 0
    %84 = vmatprep.subr.mxu0 0.0
    %85 = vmatpush1.msra.mxu0 0.0
    %86 = vmatprep.subr.mxu0 0.0
    %87 = vmatpush1.msra.mxu0 0.0
    %88 = vmatprep.subr.mxu0 0.0
    %89 = vmatpush1.msra.mxu0 0.0
    %90 = vmatprep.subr.mxu0 0.0
    %91 = vmatpush1.msra.mxu0 0.0
    %92 = vmatprep.subr.mxu0 0.0
    %93 = vmatpush1.msra.mxu0 0.0
    %94 = vmatprep.subr.mxu0 0.0
    %95 = vmatpush1.msra.mxu0 0.0
    %96 = vmatprep.subr.mxu0 0.0
    %97 = vmatpush1.msra.mxu0 0.0
    %98 = vmatprep.subr.mxu0 0.0
    %99 = vmatpush1.msra.mxu0 0.0
    %100 = vmatprep.subr.mxu0 0.0
    %101 = vmatpush1.msra.mxu0 0.0
    %102 = vmatprep.subr.mxu0 0.0
    %103 = vmatpush1.msra.mxu0 0.0
    %104 = vmatprep.subr.mxu0 0.0
    %105 = vmatpush1.msra.mxu0 0.0
    %106 = vmatprep.subr.mxu0 0.0
    %107 = vmatpush1.msra.mxu0 0.0
    %108 = vmatprep.subr.mxu0 0.0
    %109 = vmatpush1.msra.mxu0 %v22
    %110 = vmatprep.subr.mxu0 0.0
    %111 = vmatpush1.msra.mxu0 %v21
    %112 = vmatprep.subr.mxu0 0.0
    %113 = vmatpush1.msra.mxu0 %v20
    %114 = vmatprep.subr.mxu0 0.0
    %115 = vmatpush1.msra.mxu0 %v19
    %116 = vmatprep.subr.mxu0 0.0
    %117 = vmatpush2.msra.mxu0 0.0
    %118 = vmatprep.subr.mxu0 0.0
    %119 = vmatpush2.msra.mxu0 0.0
    %120 = vmatprep.subr.mxu0 0.0
    %121 = vmatpush2.msra.mxu0 0.0
    %122 = vmatprep.subr.mxu0 0.0
    %123 = vmatpush2.msra.mxu0 0.0
    %124 = vmatprep.subr.mxu0 0.0
    %125 = vmatpush2.msra.mxu0 0.0
    %126 = vmatprep.subr.mxu0 0.0
    %127 = vmatpush2.msra.mxu0 0.0
    %128 = vmatprep.subr.mxu0 0.0
    %129 = vmatpush2.msra.mxu0 0.0
    %130 = vmatprep.subr.mxu0 0.0
    %131 = vmatpush2.msra.mxu0 0.0
    %132 = vmatprep.subr.mxu0 0.0
    %133 = vmatpush2.msra.mxu0 0.0
    %134 = vmatprep.subr.mxu0 0.0
    %135 = vmatpush2.msra.mxu0 0.0
    %136 = vmatprep.subr.mxu0 0.0
    %137 = vmatpush2.msra.mxu0 0.0
    %138 = vmatprep.subr.mxu0 0.0
    %139 = vmatpush2.msra.mxu0 0.0
    %140 = vmatprep.subr.mxu0 0.0
    %141 = vmatpush2.msra.mxu0 0.0
    %142 = vmatprep.subr.mxu0 0.0
    %143 = vmatpush2.msra.mxu0 0.0
    %144 = vmatprep.subr.mxu0 0.0
    %145 = vmatpush2.msra.mxu0 0.0
    %146 = vmatprep.subr.mxu0 0.0
    %147 = vmatpush2.msra.mxu0 0.0
    %148 = vmatprep.mubr.f32.mxu0 0.0
    %149 = vmatmul.mubr.f32.gmra.mxu0 %v67
    %v150 = vpop.f32.mrf.mxu0
    %v151 = vadd.f32 %v38, %v150
    %v152 = vpop.f32.mrf.mxu0
    %153 = vmatprep.mubr.f32.mxu0 0.0
    %154 = vmatmul.mubr.f32.gmra.mxu0 %v70
    %v155 = vpop.f32.mrf.mxu0
    %v156 = vadd.f32 %v43, %v155
    %v157 = vpop.f32.mrf.mxu0
    %158 = vmatprep.mubr.f32.mxu0 0.0
    %159 = vmatmul.mubr.f32.gmra.mxu0 %v73
    %v160 = vpop.f32.mrf.mxu0
    %v161 = vadd.f32 %v48, %v160
    %v162 = vpop.f32.mrf.mxu0
    %163 = vmatprep.mubr.f32.mxu0 0.0
    %164 = vmatmul.mubr.f32.gmra.mxu0 %v76
    %v165 = vpop.f32.mrf.mxu0
    %v166 = vadd.f32 %v53, %v165
    %v167 = vpop.f32.mrf.mxu0
    %168 = vmatprep.mubr.f32.mxu0 0.0
    %169 = vmatmul.mubr.f32.gmra.mxu0 %v79
    %v170 = vpop.f32.mrf.mxu0
    %v171 = vadd.f32 %v58, %v170
    %v172 = vpop.f32.mrf.mxu0
    %173 = vmatprep.mubr.f32.mxu0 0.0
    %174 = vmatmul.mubr.f32.gmra.mxu0 %v82
    %v175 = vpop.f32.mrf.mxu0
    %v176 = vadd.f32 %v63, %v175
    %v177 = vpop.f32.mrf.mxu0
    %178 = vdwg.mxu0
    %s179 = sld [smem:[#allocation2]]
    %180 = vxpose.xlu0.b32.start [1/16] %v151, 128
    %181 = vxpose.xlu0.b32.cont [2/16] 0.0, 128
    %182 = vxpose.xlu0.b32.cont [3/16] 0.0, 128
    %183 = vxpose.xlu0.b32.cont [4/16] 0.0, 128
    %184 = vxpose.xlu0.b32.cont [5/16] 0.0, 128
    %185 = vxpose.xlu0.b32.cont [6/16] 0.0, 128
    %186 = vxpose.xlu0.b32.cont [7/16] 0.0, 128
    %187 = vxpose.xlu0.b32.cont [8/16] 0.0, 128
    %188 = vxpose.xlu0.b32.cont [9/16] 0.0, 128
    %189 = vxpose.xlu0.b32.cont [10/16] 0.0, 128
    %190 = vxpose.xlu0.b32.cont [11/16] 0.0, 128
    %191 = vxpose.xlu0.b32.cont [12/16] 0.0, 128
    %192 = vxpose.xlu0.b32.cont [13/16] 0.0, 128
    %193 = vxpose.xlu0.b32.cont [14/16] 0.0, 128
    %194 = vxpose.xlu0.b32.cont [15/16] 0.0, 128
    %195 = vxpose.xlu0.b32.end [16/16] 0.0, 128
    %v196 = vpop.trf.xlu0
    %v197 = vpop.trf.xlu0
    %v198 = vpop.trf.xlu0
    %v199 = vpop.trf.xlu0
    %v200 = vpop.trf.xlu0
    %v201 = vpop.trf.xlu0
    %v202 = vpop.trf.xlu0
    %v203 = vpop.trf.xlu0
    %v204 = vpop.trf.xlu0
    %v205 = vpop.trf.xlu0
    %v206 = vpop.trf.xlu0
    %v207 = vpop.trf.xlu0
    %v208 = vpop.trf.xlu0
    %v209 = vpop.trf.xlu0
    %v210 = vpop.trf.xlu0
    %v211 = vpop.trf.xlu0
    %vm212 = vcmask 64512
    %v214 = vsel %vm212, %v196, 0
    %v217 = vsel %vm212, %v197, 0
    %v220 = vsel %vm212, %v198, 0
    %v223 = vsel %vm212, %v199, 0
    %v226 = vsel %vm212, %v200, 0
    %v229 = vsel %vm212, %v201, 0
    %v232 = vsel %vm212, %v202, 0
    %v235 = vsel %vm212, %v203, 0
    %237 = vmatprep.subr.mxu0 0.0
    %238 = vmatpush1.msra.mxu0 0.0
    %239 = vmatprep.subr.mxu0 0.0
    %240 = vmatpush1.msra.mxu0 0.0
    %241 = vmatprep.subr.mxu0 0.0
    %242 = vmatpush1.msra.mxu0 0.0
    %243 = vmatprep.subr.mxu0 0.0
    %244 = vmatpush1.msra.mxu0 0.0
    %245 = vmatprep.subr.mxu0 0.0
    %246 = vmatpush1.msra.mxu0 0.0
    %247 = vmatprep.subr.mxu0 0.0
    %248 = vmatpush1.msra.mxu0 0.0
    %249 = vmatprep.subr.mxu0 0.0
    %250 = vmatpush1.msra.mxu0 0.0
    %251 = vmatprep.subr.mxu0 0.0
    %252 = vmatpush1.msra.mxu0 0.0
    %253 = vmatprep.subr.mxu0 0.0
    %254 = vmatpush1.msra.mxu0 0.0
    %255 = vmatprep.subr.mxu0 0.0
    %256 = vmatpush1.msra.mxu0 0.0
    %257 = vmatprep.subr.mxu0 0.0
    %258 = vmatpush1.msra.mxu0 0.0
    %259 = vmatprep.subr.mxu0 0.0
    %260 = vmatpush1.msra.mxu0 0.0
    %261 = vmatprep.subr.mxu0 0.0
    %262 = vmatpush1.msra.mxu0 0.0
    %263 = vmatprep.subr.mxu0 0.0
    %264 = vmatpush1.msra.mxu0 0.0
    %265 = vmatprep.subr.mxu0 0.0
    %266 = vmatpush1.msra.mxu0 0.0
    %267 = vmatprep.subr.mxu0 0.0
    %268 = vmatpush1.msra.mxu0 %v156
    %269 = vmatprep.subr.mxu0 0.0
    %270 = vmatpush2.msra.mxu0 0.0
    %271 = vmatprep.subr.mxu0 0.0
    %272 = vmatpush2.msra.mxu0 0.0
    %273 = vmatprep.subr.mxu0 0.0
    %274 = vmatpush2.msra.mxu0 0.0
    %275 = vmatprep.subr.mxu0 0.0
    %276 = vmatpush2.msra.mxu0 0.0
    %277 = vmatprep.subr.mxu0 0.0
    %278 = vmatpush2.msra.mxu0 0.0
    %279 = vmatprep.subr.mxu0 0.0
    %280 = vmatpush2.msra.mxu0 0.0
    %281 = vmatprep.subr.mxu0 0.0
    %282 = vmatpush2.msra.mxu0 0.0
    %283 = vmatprep.subr.mxu0 0.0
    %284 = vmatpush2.msra.mxu0 0.0
    %285 = vmatprep.subr.mxu0 0.0
    %286 = vmatpush2.msra.mxu0 0.0
    %287 = vmatprep.subr.mxu0 0.0
    %288 = vmatpush2.msra.mxu0 0.0
    %289 = vmatprep.subr.mxu0 0.0
    %290 = vmatpush2.msra.mxu0 0.0
    %291 = vmatprep.subr.mxu0 0.0
    %292 = vmatpush2.msra.mxu0 0.0
    %293 = vmatprep.subr.mxu0 0.0
    %294 = vmatpush2.msra.mxu0 0.0
    %295 = vmatprep.subr.mxu0 0.0
    %296 = vmatpush2.msra.mxu0 0.0
    %297 = vmatprep.subr.mxu0 0.0
    %298 = vmatpush2.msra.mxu0 0.0
    %299 = vmatprep.subr.mxu0 0.0
    %300 = vmatpush2.msra.mxu0 0.0
    %301 = vmatprep.mubr.f32.mxu0 0.0
    %302 = vmatmul.mubr.f32.gmra.mxu0 %v214
    %v303 = vpop.f32.mrf.mxu0
    %v304 = vadd.f32 0.0, %v303
    %v305 = vpop.f32.mrf.mxu0
    %306 = vmatprep.mubr.f32.mxu0 0.0
    %307 = vmatmul.mubr.f32.gmra.mxu0 %v217
    %v308 = vpop.f32.mrf.mxu0
    %v309 = vadd.f32 0.0, %v308
    %v310 = vpop.f32.mrf.mxu0
    %311 = vmatprep.mubr.f32.mxu0 0.0
    %312 = vmatmul.mubr.f32.gmra.mxu0 %v220
    %v313 = vpop.f32.mrf.mxu0
    %v314 = vadd.f32 0.0, %v313
    %v315 = vpop.f32.mrf.mxu0
    %316 = vmatprep.mubr.f32.mxu0 0.0
    %317 = vmatmul.mubr.f32.gmra.mxu0 %v223
    %v318 = vpop.f32.mrf.mxu0
    %v319 = vadd.f32 0.0, %v318
    %v320 = vpop.f32.mrf.mxu0
    %321 = vmatprep.mubr.f32.mxu0 0.0
    %322 = vmatmul.mubr.f32.gmra.mxu0 %v226
    %v323 = vpop.f32.mrf.mxu0
    %v324 = vadd.f32 0.0, %v323
    %v325 = vpop.f32.mrf.mxu0
    %326 = vmatprep.mubr.f32.mxu0 0.0
    %327 = vmatmul.mubr.f32.gmra.mxu0 %v229
    %v328 = vpop.f32.mrf.mxu0
    %v329 = vadd.f32 0.0, %v328
    %v330 = vpop.f32.mrf.mxu0
    %331 = vmatprep.mubr.f32.mxu0 0.0
    %332 = vmatmul.mubr.f32.gmra.mxu0 %v232
    %v333 = vpop.f32.mrf.mxu0
    %v334 = vadd.f32 0.0, %v333
    %v335 = vpop.f32.mrf.mxu0
    %336 = vmatprep.mubr.f32.mxu0 0.0
    %337 = vmatmul.mubr.f32.gmra.mxu0 %v235
    %v338 = vpop.f32.mrf.mxu0
    %v339 = vadd.f32 0.0, %v338
    %v340 = vpop.f32.mrf.mxu0
    %341 = vdwg.mxu0
    %vm342 = vcmask 523264
    %v343 = vsel %vm342, %v304, -inf
    %344 = vmax.xlane.f32.xlu0 %v343
    %v345 = vpop.xlane.xlu0 %344
    %v346 = vsel %vm342, %v309, -inf
    %347 = vmax.xlane.f32.xlu0 %v346
    %v348 = vpop.xlane.xlu0 %347
    %v349 = vsel %vm342, %v314, -inf
    %350 = vmax.xlane.f32.xlu0 %v349
    %v351 = vpop.xlane.xlu0 %350
    %v352 = vsel %vm342, %v319, -inf
    %353 = vmax.xlane.f32.xlu0 %v352
    %v354 = vpop.xlane.xlu0 %353
    %v355 = vsel %vm342, %v324, -inf
    %356 = vmax.xlane.f32.xlu0 %v355
    %v357 = vpop.xlane.xlu0 %356
    %v358 = vsel %vm342, %v329, -inf
    %359 = vmax.xlane.f32.xlu0 %v358
    %v360 = vpop.xlane.xlu0 %359
    %v361 = vsel %vm342, %v334, -inf
    %362 = vmax.xlane.f32.xlu0 %v361
    %v363 = vpop.xlane.xlu0 %362
    %v364 = vsel %vm342, %v339, -inf
    %365 = vmax.xlane.f32.xlu0 %v364
    %v366 = vpop.xlane.xlu0 %365
    %v367 = vsub.f32 %v304, %v345
    %v368 = vsub.f32 %v309, %v348
    %v369 = vsub.f32 %v314, %v351
    %v370 = vsub.f32 %v319, %v354
    %v371 = vsub.f32 %v324, %v357
    %v372 = vsub.f32 %v329, %v360
    %v373 = vsub.f32 %v334, %v363
    %v374 = vsub.f32 %v339, %v366
    %v375 = vmul.f32 %v367, 1.442695
    %v376 = vpow.pop %v375
    %v377 = vmul.f32 %v368, 1.442695
    %v378 = vpow.pop %v377
    %v379 = vmul.f32 %v369, 1.442695
    %v380 = vpow.pop %v379
    %v381 = vmul.f32 %v370, 1.442695
    %v382 = vpow.pop %v381
    %v383 = vmul.f32 %v371, 1.442695
    %v384 = vpow.pop %v383
    %v385 = vmul.f32 %v372, 1.442695
    %v386 = vpow.pop %v385
    %v387 = vmul.f32 %v373, 1.442695
    %v388 = vpow.pop %v387
    %v389 = vmul.f32 %v374, 1.442695
    %v390 = vpow.pop %v389
    %v391 = vsel %vm342, %v376, 0.0
    %392 = vadd.xlane.f32.xlu0 %v391
    %v393 = vpop.xlane.xlu0 %392
    %v394 = vsel %vm342, %v378, 0.0
    %395 = vadd.xlane.f32.xlu0 %v394
    %v396 = vpop.xlane.xlu0 %395
    %v397 = vsel %vm342, %v380, 0.0
    %398 = vadd.xlane.f32.xlu0 %v397
    %v399 = vpop.xlane.xlu0 %398
    %v400 = vsel %vm342, %v382, 0.0
    %401 = vadd.xlane.f32.xlu0 %v400
    %v402 = vpop.xlane.xlu0 %401
    %v403 = vsel %vm342, %v384, 0.0
    %404 = vadd.xlane.f32.xlu0 %v403
    %v405 = vpop.xlane.xlu0 %404
    %v406 = vsel %vm342, %v386, 0.0
    %407 = vadd.xlane.f32.xlu0 %v406
    %v408 = vpop.xlane.xlu0 %407
    %v409 = vsel %vm342, %v388, 0.0
    %410 = vadd.xlane.f32.xlu0 %v409
    %v411 = vpop.xlane.xlu0 %410
    %v412 = vsel %vm342, %v390, 0.0
    %413 = vadd.xlane.f32.xlu0 %v412
    %v414 = vpop.xlane.xlu0 %413
    %v415 = vrcp.pop %v393
    %v416 = vmul.f32 %v376, %v415
    %v417 = vrcp.pop %v396
    %v418 = vmul.f32 %v378, %v417
    %v419 = vrcp.pop %v399
    %v420 = vmul.f32 %v380, %v419
    %v421 = vrcp.pop %v402
    %v422 = vmul.f32 %v382, %v421
    %v423 = vrcp.pop %v405
    %v424 = vmul.f32 %v384, %v423
    %v425 = vrcp.pop %v408
    %v426 = vmul.f32 %v386, %v425
    %v427 = vrcp.pop %v411
    %v428 = vmul.f32 %v388, %v427
    %v429 = vrcp.pop %v414
    %v430 = vmul.f32 %v390, %v429
    %v432 = vsel %vm342, %v161, 0
    %v435 = vsel %vm342, %v166, 0
    %v438 = vsel %vm342, %v171, 0
    %v441 = vsel %vm342, %v176, 0
    %v444 = vsel %vm342, %v416, 0
    %v447 = vsel %vm342, %v418, 0
    %v450 = vsel %vm342, %v420, 0
    %v453 = vsel %vm342, %v422, 0
    %v456 = vsel %vm342, %v424, 0
    %v459 = vsel %vm342, %v426, 0
    %v462 = vsel %vm342, %v428, 0
    %v465 = vsel %vm342, %v430, 0
    %467 = vmatprep.subr.mxu0 0.0
    %468 = vmatpush1.xpose.msra.mxu0 0.0
    %469 = vmatprep.subr.mxu0 0.0
    %470 = vmatpush1.xpose.msra.mxu0 0.0
    %471 = vmatprep.subr.mxu0 0.0
    %472 = vmatpush1.xpose.msra.mxu0 0.0
    %473 = vmatprep.subr.mxu0 0.0
    %474 = vmatpush1.xpose.msra.mxu0 0.0
    %475 = vmatprep.subr.mxu0 0.0
    %476 = vmatpush1.xpose.msra.mxu0 0.0
    %477 = vmatprep.subr.mxu0 0.0
    %478 = vmatpush1.xpose.msra.mxu0 0.0
    %479 = vmatprep.subr.mxu0 0.0
    %480 = vmatpush1.xpose.msra.mxu0 0.0
    %481 = vmatprep.subr.mxu0 0.0
    %482 = vmatpush1.xpose.msra.mxu0 0.0
    %483 = vmatprep.subr.mxu0 0.0
    %484 = vmatpush1.xpose.msra.mxu0 %v465
    %485 = vmatprep.subr.mxu0 0.0
    %486 = vmatpush1.xpose.msra.mxu0 %v462
    %487 = vmatprep.subr.mxu0 0.0
    %488 = vmatpush1.xpose.msra.mxu0 %v459
    %489 = vmatprep.subr.mxu0 0.0
    %490 = vmatpush1.xpose.msra.mxu0 %v456
    %491 = vmatprep.subr.mxu0 0.0
    %492 = vmatpush1.xpose.msra.mxu0 %v453
    %493 = vmatprep.subr.mxu0 0.0
    %494 = vmatpush1.xpose.msra.mxu0 %v450
    %495 = vmatprep.subr.mxu0 0.0
    %496 = vmatpush1.xpose.msra.mxu0 %v447
    %497 = vmatprep.subr.mxu0 0.0
    %498 = vmatpush1.xpose.msra.mxu0 %v444
    %499 = vmatprep.subr.mxu0 0.0
    %500 = vmatpush2.xpose.msra.mxu0 0.0
    %501 = vmatprep.subr.mxu0 0.0
    %502 = vmatpush2.xpose.msra.mxu0 0.0
    %503 = vmatprep.subr.mxu0 0.0
    %504 = vmatpush2.xpose.msra.mxu0 0.0
    %505 = vmatprep.subr.mxu0 0.0
    %506 = vmatpush2.xpose.msra.mxu0 0.0
    %507 = vmatprep.subr.mxu0 0.0
    %508 = vmatpush2.xpose.msra.mxu0 0.0
    %509 = vmatprep.subr.mxu0 0.0
    %510 = vmatpush2.xpose.msra.mxu0 0.0
    %511 = vmatprep.subr.mxu0 0.0
    %512 = vmatpush2.xpose.msra.mxu0 0.0
    %513 = vmatprep.subr.mxu0 0.0
    %514 = vmatpush2.xpose.msra.mxu0 0.0
    %515 = vmatprep.subr.mxu0 0.0
    %516 = vmatpush2.xpose.msra.mxu0 0.0
    %517 = vmatprep.subr.mxu0 0.0
    %518 = vmatpush2.xpose.msra.mxu0 0.0
    %519 = vmatprep.subr.mxu0 0.0
    %520 = vmatpush2.xpose.msra.mxu0 0.0
    %521 = vmatprep.subr.mxu0 0.0
    %522 = vmatpush2.xpose.msra.mxu0 0.0
    %523 = vmatprep.subr.mxu0 0.0
    %524 = vmatpush2.xpose.msra.mxu0 0.0
    %525 = vmatprep.subr.mxu0 0.0
    %526 = vmatpush2.xpose.msra.mxu0 0.0
    %527 = vmatprep.subr.mxu0 0.0
    %528 = vmatpush2.xpose.msra.mxu0 0.0
    %529 = vmatprep.subr.mxu0 0.0
    %530 = vmatpush2.xpose.msra.mxu0 0.0
    %531 = vmatprep.mubr.f32.mxu0 0.0
    %532 = vmatmul.mubr.f32.gmra.mxu0 %v432
    %v533 = vpop.f32.mrf.mxu0
    %v534 = vadd.f32 0.0, %v533
    %v535 = vpop.f32.mrf.mxu0
    %536 = vmatprep.mubr.f32.mxu0 0.0
    %537 = vmatmul.mubr.f32.gmra.mxu0 %v435
    %v538 = vpop.f32.mrf.mxu0
    %v539 = vadd.f32 0.0, %v538
    %v540 = vpop.f32.mrf.mxu0
    %541 = vmatprep.mubr.f32.mxu0 0.0
    %542 = vmatmul.mubr.f32.gmra.mxu0 %v438
    %v543 = vpop.f32.mrf.mxu0
    %v544 = vadd.f32 0.0, %v543
    %v545 = vpop.f32.mrf.mxu0
    %546 = vmatprep.mubr.f32.mxu0 0.0
    %547 = vmatmul.mubr.f32.gmra.mxu0 %v441
    %v548 = vpop.f32.mrf.mxu0
    %v549 = vadd.f32 0.0, %v548
    %v550 = vpop.f32.mrf.mxu0
    %551 = vdwg.mxu0
    %v552 = vstv %s179
    %v553 = vmul.f32 %v552, %v534
    %v554 = vmul.f32 %v552, %v539
    %v555 = vmul.f32 %v552, %v544
    %v556 = vmul.f32 %v552, %v549
    %v557 = vadd.f32 %v553, %v19
    %v558 = vadd.f32 %v554, %v20
    %v559 = vadd.f32 %v555, %v21
    %v560 = vadd.f32 %v556, %v22
    %561 = vst.msk [vmem:[#allocation3] sm:$0xff] %vm342, %v557
    %562 = vst.msk [vmem:[#allocation3 + $0x8] sm:$0xff] %vm342, %v558
    %563 = vst.msk [vmem:[#allocation3 + $0x10] sm:$0xff] %vm342, %v559
    %564 = vst.msk [vmem:[#allocation3 + $0x18] sm:$0xff] %vm342, %v560
    %566 = vrot.lane.b32.xlu0 %v151, 64
    %v567 = vpop.permute.xlu0 %566
    %569 = vxpose.xlu0.b32.start [1/16] %v567, 128
    %570 = vxpose.xlu0.b32.cont [2/16] 0.0, 128
    %571 = vxpose.xlu0.b32.cont [3/16] 0.0, 128
    %572 = vxpose.xlu0.b32.cont [4/16] 0.0, 128
    %573 = vxpose.xlu0.b32.cont [5/16] 0.0, 128
    %574 = vxpose.xlu0.b32.cont [6/16] 0.0, 128
    %575 = vxpose.xlu0.b32.cont [7/16] 0.0, 128
    %576 = vxpose.xlu0.b32.cont [8/16] 0.0, 128
    %577 = vxpose.xlu0.b32.cont [9/16] 0.0, 128
    %578 = vxpose.xlu0.b32.cont [10/16] 0.0, 128
    %579 = vxpose.xlu0.b32.cont [11/16] 0.0, 128
    %580 = vxpose.xlu0.b32.cont [12/16] 0.0, 128
    %581 = vxpose.xlu0.b32.cont [13/16] 0.0, 128
    %582 = vxpose.xlu0.b32.cont [14/16] 0.0, 128
    %583 = vxpose.xlu0.b32.cont [15/16] 0.0, 128
    %584 = vxpose.xlu0.b32.end [16/16] 0.0, 128
    %v585 = vpop.trf.xlu0
    %v586 = vpop.trf.xlu0
    %v587 = vpop.trf.xlu0
    %v588 = vpop.trf.xlu0
    %v589 = vpop.trf.xlu0
    %v590 = vpop.trf.xlu0
    %v591 = vpop.trf.xlu0
    %v592 = vpop.trf.xlu0
    %v593 = vpop.trf.xlu0
    %v594 = vpop.trf.xlu0
    %v595 = vpop.trf.xlu0
    %v596 = vpop.trf.xlu0
    %v597 = vpop.trf.xlu0
    %v598 = vpop.trf.xlu0
    %v599 = vpop.trf.xlu0
    %v600 = vpop.trf.xlu0
    %602 = vrot.lane.b32.xlu0 %v156, 64
    %v603 = vpop.permute.xlu0 %602
    %v606 = vsel %vm212, %v585, 0
    %v609 = vsel %vm212, %v586, 0
    %v612 = vsel %vm212, %v587, 0
    %v615 = vsel %vm212, %v588, 0
    %v618 = vsel %vm212, %v589, 0
    %v621 = vsel %vm212, %v590, 0
    %v624 = vsel %vm212, %v591, 0
    %v627 = vsel %vm212, %v592, 0
    %629 = vmatprep.subr.mxu0 0.0
    %630 = vmatpush1.msra.mxu0 0.0
    %631 = vmatprep.subr.mxu0 0.0
    %632 = vmatpush1.msra.mxu0 0.0
    %633 = vmatprep.subr.mxu0 0.0
    %634 = vmatpush1.msra.mxu0 0.0
    %635 = vmatprep.subr.mxu0 0.0
    %636 = vmatpush1.msra.mxu0 0.0
    %637 = vmatprep.subr.mxu0 0.0
    %638 = vmatpush1.msra.mxu0 0.0
    %639 = vmatprep.subr.mxu0 0.0
    %640 = vmatpush1.msra.mxu0 0.0
    %641 = vmatprep.subr.mxu0 0.0
    %642 = vmatpush1.msra.mxu0 0.0
    %643 = vmatprep.subr.mxu0 0.0
    %644 = vmatpush1.msra.mxu0 0.0
    %645 = vmatprep.subr.mxu0 0.0
    %646 = vmatpush1.msra.mxu0 0.0
    %647 = vmatprep.subr.mxu0 0.0
    %648 = vmatpush1.msra.mxu0 0.0
    %649 = vmatprep.subr.mxu0 0.0
    %650 = vmatpush1.msra.mxu0 0.0
    %651 = vmatprep.subr.mxu0 0.0
    %652 = vmatpush1.msra.mxu0 0.0
    %653 = vmatprep.subr.mxu0 0.0
    %654 = vmatpush1.msra.mxu0 0.0
    %655 = vmatprep.subr.mxu0 0.0
    %656 = vmatpush1.msra.mxu0 0.0
    %657 = vmatprep.subr.mxu0 0.0
    %658 = vmatpush1.msra.mxu0 0.0
    %659 = vmatprep.subr.mxu0 0.0
    %660 = vmatpush1.msra.mxu0 %v603
    %661 = vmatprep.subr.mxu0 0.0
    %662 = vmatpush2.msra.mxu0 0.0
    %663 = vmatprep.subr.mxu0 0.0
    %664 = vmatpush2.msra.mxu0 0.0
    %665 = vmatprep.subr.mxu0 0.0
    %666 = vmatpush2.msra.mxu0 0.0
    %667 = vmatprep.subr.mxu0 0.0
    %668 = vmatpush2.msra.mxu0 0.0
    %669 = vmatprep.subr.mxu0 0.0
    %670 = vmatpush2.msra.mxu0 0.0
    %671 = vmatprep.subr.mxu0 0.0
    %672 = vmatpush2.msra.mxu0 0.0
    %673 = vmatprep.subr.mxu0 0.0
    %674 = vmatpush2.msra.mxu0 0.0
    %675 = vmatprep.subr.mxu0 0.0
    %676 = vmatpush2.msra.mxu0 0.0
    %677 = vmatprep.subr.mxu0 0.0
    %678 = vmatpush2.msra.mxu0 0.0
    %679 = vmatprep.subr.mxu0 0.0
    %680 = vmatpush2.msra.mxu0 0.0
    %681 = vmatprep.subr.mxu0 0.0
    %682 = vmatpush2.msra.mxu0 0.0
    %683 = vmatprep.subr.mxu0 0.0
    %684 = vmatpush2.msra.mxu0 0.0
    %685 = vmatprep.subr.mxu0 0.0
    %686 = vmatpush2.msra.mxu0 0.0
    %687 = vmatprep.subr.mxu0 0.0
    %688 = vmatpush2.msra.mxu0 0.0
    %689 = vmatprep.subr.mxu0 0.0
    %690 = vmatpush2.msra.mxu0 0.0
    %691 = vmatprep.subr.mxu0 0.0
    %692 = vmatpush2.msra.mxu0 0.0
    %693 = vmatprep.mubr.f32.mxu0 0.0
    %694 = vmatmul.mubr.f32.gmra.mxu0 %v606
    %v695 = vpop.f32.mrf.mxu0
    %v696 = vadd.f32 0.0, %v695
    %v697 = vpop.f32.mrf.mxu0
    %698 = vmatprep.mubr.f32.mxu0 0.0
    %699 = vmatmul.mubr.f32.gmra.mxu0 %v609
    %v700 = vpop.f32.mrf.mxu0
    %v701 = vadd.f32 0.0, %v700
    %v702 = vpop.f32.mrf.mxu0
    %703 = vmatprep.mubr.f32.mxu0 0.0
    %704 = vmatmul.mubr.f32.gmra.mxu0 %v612
    %v705 = vpop.f32.mrf.mxu0
    %v706 = vadd.f32 0.0, %v705
    %v707 = vpop.f32.mrf.mxu0
    %708 = vmatprep.mubr.f32.mxu0 0.0
    %709 = vmatmul.mubr.f32.gmra.mxu0 %v615
    %v710 = vpop.f32.mrf.mxu0
    %v711 = vadd.f32 0.0, %v710
    %v712 = vpop.f32.mrf.mxu0
    %713 = vmatprep.mubr.f32.mxu0 0.0
    %714 = vmatmul.mubr.f32.gmra.mxu0 %v618
    %v715 = vpop.f32.mrf.mxu0
    %v716 = vadd.f32 0.0, %v715
    %v717 = vpop.f32.mrf.mxu0
    %718 = vmatprep.mubr.f32.mxu0 0.0
    %719 = vmatmul.mubr.f32.gmra.mxu0 %v621
    %v720 = vpop.f32.mrf.mxu0
    %v721 = vadd.f32 0.0, %v720
    %v722 = vpop.f32.mrf.mxu0
    %723 = vmatprep.mubr.f32.mxu0 0.0
    %724 = vmatmul.mubr.f32.gmra.mxu0 %v624
    %v725 = vpop.f32.mrf.mxu0
    %v726 = vadd.f32 0.0, %v725
    %v727 = vpop.f32.mrf.mxu0
    %728 = vmatprep.mubr.f32.mxu0 0.0
    %729 = vmatmul.mubr.f32.gmra.mxu0 %v627
    %v730 = vpop.f32.mrf.mxu0
    %v731 = vadd.f32 0.0, %v730
    %v732 = vpop.f32.mrf.mxu0
    %733 = vdwg.mxu0
    %v734 = vsel %vm342, %v696, -inf
    %735 = vmax.xlane.f32.xlu0 %v734
    %v736 = vpop.xlane.xlu0 %735
    %v737 = vsel %vm342, %v701, -inf
    %738 = vmax.xlane.f32.xlu0 %v737
    %v739 = vpop.xlane.xlu0 %738
    %v740 = vsel %vm342, %v706, -inf
    %741 = vmax.xlane.f32.xlu0 %v740
    %v742 = vpop.xlane.xlu0 %741
    %v743 = vsel %vm342, %v711, -inf
    %744 = vmax.xlane.f32.xlu0 %v743
    %v745 = vpop.xlane.xlu0 %744
    %v746 = vsel %vm342, %v716, -inf
    %747 = vmax.xlane.f32.xlu0 %v746
    %v748 = vpop.xlane.xlu0 %747
    %v749 = vsel %vm342, %v721, -inf
    %750 = vmax.xlane.f32.xlu0 %v749
    %v751 = vpop.xlane.xlu0 %750
    %v752 = vsel %vm342, %v726, -inf
    %753 = vmax.xlane.f32.xlu0 %v752
    %v754 = vpop.xlane.xlu0 %753
    %v755 = vsel %vm342, %v731, -inf
    %756 = vmax.xlane.f32.xlu0 %v755
    %v757 = vpop.xlane.xlu0 %756
    %v758 = vsub.f32 %v696, %v736
    %v759 = vsub.f32 %v701, %v739
    %v760 = vsub.f32 %v706, %v742
    %v761 = vsub.f32 %v711, %v745
    %v762 = vsub.f32 %v716, %v748
    %v763 = vsub.f32 %v721, %v751
    %v764 = vsub.f32 %v726, %v754
    %v765 = vsub.f32 %v731, %v757
    %v766 = vmul.f32 %v758, 1.442695
    %v767 = vpow.pop %v766
    %v768 = vmul.f32 %v759, 1.442695
    %v769 = vpow.pop %v768
    %v770 = vmul.f32 %v760, 1.442695
    %v771 = vpow.pop %v770
    %v772 = vmul.f32 %v761, 1.442695
    %v773 = vpow.pop %v772
    %v774 = vmul.f32 %v762, 1.442695
    %v775 = vpow.pop %v774
    %v776 = vmul.f32 %v763, 1.442695
    %v777 = vpow.pop %v776
    %v778 = vmul.f32 %v764, 1.442695
    %v779 = vpow.pop %v778
    %v780 = vmul.f32 %v765, 1.442695
    %v781 = vpow.pop %v780
    %v782 = vsel %vm342, %v767, 0.0
    %783 = vadd.xlane.f32.xlu0 %v782
    %v784 = vpop.xlane.xlu0 %783
    %v785 = vsel %vm342, %v769, 0.0
    %786 = vadd.xlane.f32.xlu0 %v785
    %v787 = vpop.xlane.xlu0 %786
    %v788 = vsel %vm342, %v771, 0.0
    %789 = vadd.xlane.f32.xlu0 %v788
    %v790 = vpop.xlane.xlu0 %789
    %v791 = vsel %vm342, %v773, 0.0
    %792 = vadd.xlane.f32.xlu0 %v791
    %v793 = vpop.xlane.xlu0 %792
    %v794 = vsel %vm342, %v775, 0.0
    %795 = vadd.xlane.f32.xlu0 %v794
    %v796 = vpop.xlane.xlu0 %795
    %v797 = vsel %vm342, %v777, 0.0
    %798 = vadd.xlane.f32.xlu0 %v797
    %v799 = vpop.xlane.xlu0 %798
    %v800 = vsel %vm342, %v779, 0.0
    %801 = vadd.xlane.f32.xlu0 %v800
    %v802 = vpop.xlane.xlu0 %801
    %v803 = vsel %vm342, %v781, 0.0
    %804 = vadd.xlane.f32.xlu0 %v803
    %v805 = vpop.xlane.xlu0 %804
    %v806 = vrcp.pop %v784
    %v807 = vmul.f32 %v767, %v806
    %v808 = vrcp.pop %v787
    %v809 = vmul.f32 %v769, %v808
    %v810 = vrcp.pop %v790
    %v811 = vmul.f32 %v771, %v810
    %v812 = vrcp.pop %v793
    %v813 = vmul.f32 %v773, %v812
    %v814 = vrcp.pop %v796
    %v815 = vmul.f32 %v775, %v814
    %v816 = vrcp.pop %v799
    %v817 = vmul.f32 %v777, %v816
    %v818 = vrcp.pop %v802
    %v819 = vmul.f32 %v779, %v818
    %v820 = vrcp.pop %v805
    %v821 = vmul.f32 %v781, %v820
    %822 = vrot.lane.b32.xlu0 %v161, 64
    %v823 = vpop.permute.xlu0 %822
    %824 = vrot.lane.b32.xlu0 %v166, 64
    %v825 = vpop.permute.xlu0 %824
    %826 = vrot.lane.b32.xlu0 %v171, 64
    %v827 = vpop.permute.xlu0 %826
    %828 = vrot.lane.b32.xlu0 %v176, 64
    %v829 = vpop.permute.xlu0 %828
    %v830 = vsel %vm342, %v823, 0
    %v832 = vsel %vm342, %v825, 0
    %v834 = vsel %vm342, %v827, 0
    %v836 = vsel %vm342, %v829, 0
    %v839 = vsel %vm342, %v807, 0
    %v842 = vsel %vm342, %v809, 0
    %v845 = vsel %vm342, %v811, 0
    %v848 = vsel %vm342, %v813, 0
    %v851 = vsel %vm342, %v815, 0
    %v854 = vsel %vm342, %v817, 0
    %v857 = vsel %vm342, %v819, 0
    %v860 = vsel %vm342, %v821, 0
    %862 = vmatprep.subr.mxu0 0.0
    %863 = vmatpush1.xpose.msra.mxu0 0.0
    %864 = vmatprep.subr.mxu0 0.0
    %865 = vmatpush1.xpose.msra.mxu0 0.0
    %866 = vmatprep.subr.mxu0 0.0
    %867 = vmatpush1.xpose.msra.mxu0 0.0
    %868 = vmatprep.subr.mxu0 0.0
    %869 = vmatpush1.xpose.msra.mxu0 0.0
    %870 = vmatprep.subr.mxu0 0.0
    %871 = vmatpush1.xpose.msra.mxu0 0.0
    %872 = vmatprep.subr.mxu0 0.0
    %873 = vmatpush1.xpose.msra.mxu0 0.0
    %874 = vmatprep.subr.mxu0 0.0
    %875 = vmatpush1.xpose.msra.mxu0 0.0
    %876 = vmatprep.subr.mxu0 0.0
    %877 = vmatpush1.xpose.msra.mxu0 0.0
    %878 = vmatprep.subr.mxu0 0.0
    %879 = vmatpush1.xpose.msra.mxu0 %v860
    %880 = vmatprep.subr.mxu0 0.0
    %881 = vmatpush1.xpose.msra.mxu0 %v857
    %882 = vmatprep.subr.mxu0 0.0
    %883 = vmatpush1.xpose.msra.mxu0 %v854
    %884 = vmatprep.subr.mxu0 0.0
    %885 = vmatpush1.xpose.msra.mxu0 %v851
    %886 = vmatprep.subr.mxu0 0.0
    %887 = vmatpush1.xpose.msra.mxu0 %v848
    %888 = vmatprep.subr.mxu0 0.0
    %889 = vmatpush1.xpose.msra.mxu0 %v845
    %890 = vmatprep.subr.mxu0 0.0
    %891 = vmatpush1.xpose.msra.mxu0 %v842
    %892 = vmatprep.subr.mxu0 0.0
    %893 = vmatpush1.xpose.msra.mxu0 %v839
    %894 = vmatprep.subr.mxu0 0.0
    %895 = vmatpush2.xpose.msra.mxu0 0.0
    %896 = vmatprep.subr.mxu0 0.0
    %897 = vmatpush2.xpose.msra.mxu0 0.0
    %898 = vmatprep.subr.mxu0 0.0
    %899 = vmatpush2.xpose.msra.mxu0 0.0
    %900 = vmatprep.subr.mxu0 0.0
    %901 = vmatpush2.xpose.msra.mxu0 0.0
    %902 = vmatprep.subr.mxu0 0.0
    %903 = vmatpush2.xpose.msra.mxu0 0.0
    %904 = vmatprep.subr.mxu0 0.0
    %905 = vmatpush2.xpose.msra.mxu0 0.0
    %906 = vmatprep.subr.mxu0 0.0
    %907 = vmatpush2.xpose.msra.mxu0 0.0
    %908 = vmatprep.subr.mxu0 0.0
    %909 = vmatpush2.xpose.msra.mxu0 0.0
    %910 = vmatprep.subr.mxu0 0.0
    %911 = vmatpush2.xpose.msra.mxu0 0.0
    %912 = vmatprep.subr.mxu0 0.0
    %913 = vmatpush2.xpose.msra.mxu0 0.0
    %914 = vmatprep.subr.mxu0 0.0
    %915 = vmatpush2.xpose.msra.mxu0 0.0
    %916 = vmatprep.subr.mxu0 0.0
    %917 = vmatpush2.xpose.msra.mxu0 0.0
    %918 = vmatprep.subr.mxu0 0.0
    %919 = vmatpush2.xpose.msra.mxu0 0.0
    %920 = vmatprep.subr.mxu0 0.0
    %921 = vmatpush2.xpose.msra.mxu0 0.0
    %922 = vmatprep.subr.mxu0 0.0
    %923 = vmatpush2.xpose.msra.mxu0 0.0
    %924 = vmatprep.subr.mxu0 0.0
    %925 = vmatpush2.xpose.msra.mxu0 0.0
    %926 = vmatprep.mubr.f32.mxu0 0.0
    %927 = vmatmul.mubr.f32.gmra.mxu0 %v830
    %v928 = vpop.f32.mrf.mxu0
    %v929 = vadd.f32 0.0, %v928
    %v930 = vpop.f32.mrf.mxu0
    %931 = vmatprep.mubr.f32.mxu0 0.0
    %932 = vmatmul.mubr.f32.gmra.mxu0 %v832
    %v933 = vpop.f32.mrf.mxu0
    %v934 = vadd.f32 0.0, %v933
    %v935 = vpop.f32.mrf.mxu0
    %936 = vmatprep.mubr.f32.mxu0 0.0
    %937 = vmatmul.mubr.f32.gmra.mxu0 %v834
    %v938 = vpop.f32.mrf.mxu0
    %v939 = vadd.f32 0.0, %v938
    %v940 = vpop.f32.mrf.mxu0
    %941 = vmatprep.mubr.f32.mxu0 0.0
    %942 = vmatmul.mubr.f32.gmra.mxu0 %v836
    %v943 = vpop.f32.mrf.mxu0
    %v944 = vadd.f32 0.0, %v943
    %v945 = vpop.f32.mrf.mxu0
    %946 = vdwg.mxu0
    %v947 = vld [vmem:[%s0] sm:$0xff]
    %v948 = vld [vmem:[%s0 + $0x8] sm:$0xff]
    %v949 = vld [vmem:[%s0 + $0x10] sm:$0xff]
    %v950 = vld [vmem:[%s0 + $0x18] sm:$0xff]
    %v951 = vmul.f32 %v552, %v929
    %v952 = vmul.f32 %v552, %v934
    %v953 = vmul.f32 %v552, %v939
    %v954 = vmul.f32 %v552, %v944
    %959 = vrot.lane.b32.xlu0 %v947, 64
    %v960 = vpop.permute.xlu0 %959
    %961 = vrot.lane.b32.xlu0 %v948, 64
    %v962 = vpop.permute.xlu0 %961
    %963 = vrot.lane.b32.xlu0 %v949, 64
    %v964 = vpop.permute.xlu0 %963
    %965 = vrot.lane.b32.xlu0 %v950, 64
    %v966 = vpop.permute.xlu0 %965
    %v971 = vadd.f32 %v951, %v960
    %v972 = vadd.f32 %v952, %v962
    %v973 = vadd.f32 %v953, %v964
    %v974 = vadd.f32 %v954, %v966
    %979 = vrot.lane.b32.xlu0 %v971, 64
    %v980 = vpop.permute.xlu0 %979
    %981 = vrot.lane.b32.xlu0 %v972, 64
    %v982 = vpop.permute.xlu0 %981
    %983 = vrot.lane.b32.xlu0 %v973, 64
    %v984 = vpop.permute.xlu0 %983
    %985 = vrot.lane.b32.xlu0 %v974, 64
    %v986 = vpop.permute.xlu0 %985
    %vm991 = vcmask 1048064
    %992 = vst.msk [vmem:[#allocation3] sm:$0xff] %vm991, %v980
    %993 = vst.msk [vmem:[#allocation3 + $0x8] sm:$0xff] %vm991, %v982
    %994 = vst.msk [vmem:[#allocation3 + $0x10] sm:$0xff] %vm991, %v984
    %995 = vst.msk [vmem:[#allocation3 + $0x18] sm:$0xff] %vm991, %v986
    // Predicated region
    $region18: #{tpu_custom_call.1} parent=1 // pred_check
      _
    $region19: #{tpu_custom_call.1} parent=1 // pred_check_branch
      %997 = sbr.rel (0) target = $region21
    $region20: #{tpu_custom_call.1} parent=1 // pred_region
      %s999 = ssub.s32 512, 512
      %1000 = vsyncadd [#allocation4], %s999
      %s1001 = sshll.u32 [#allocation3], 4
      %s1002 = int_to_ptr.vmem [resolvable:$true] %s1001
      %1007 = dma.vmem_to_hbm [thread:$0]  %s1002, 512, %s4, [#allocation4], 128, 128, 8
    $region21: #{tpu_custom_call.1} parent=1 // pred_fallthru
      _
    // Predicated region
    $region22: #{tpu_custom_call.1} parent=1 // pred_check
      _
    $region23: #{tpu_custom_call.1} parent=1 // pred_check_branch
      %1009 = sbr.rel (0) target = $region25
    $region24: #{tpu_custom_call.1} parent=1 // pred_region
      %1010 = dma.done [#allocation4], 512
    $region25: #{tpu_custom_call.1} parent=1 // pred_fallthru
      _
    %1011 = vsyncpa [#allocation4], 1

</llo_original>
